<compile_context>
chip_gen: v6e
topology: v6e:2x2x1
jax: 0.10.0
libtpu: 0.0.40
codegen_flags: <defaults>
</compile_context>

<pallas_src>
import functools

import jax
import jax.numpy as jnp
from jax import lax
from jax.experimental import pallas as pl
from jax.experimental.pallas import tpu as pltpu

HIDDEN_RATIO = 4          # hidden_ratio in FactorizedNeuralSampler
NEG_SLOPE = 0.2           # LeakySiLU(negative_slope=0.2)
BN_EPS = 1e-5             # torch.nn.BatchNorm1d default eps


def _leaky_silu(x):
    # (1-a)*silu(x) + a*x  ==  x * (a + (1-a)*sigmoid(x))   [one fewer vmul]
    return x * (NEG_SLOPE + (1.0 - NEG_SLOPE) * jax.nn.sigmoid(x))


def factorized_sampler_kernel(eps_ref, w_ref, b_ref, out_ref):
    Z = eps_ref.shape[1]                                   # static
    eps = eps_ref[...]                                     # (B, Z) f32

    # layer 1: grouped conv (1->4 per group), block-diag (Z, 4Z)
    h = jnp.dot(eps, w_ref[0, :Z, :],
                preferred_element_type=jnp.float32) + b_ref[0:1, :]
    h = _leaky_silu(h)
    # layer 2: grouped conv (4->4 per group), block-diag (4Z, 4Z)
    h = jnp.dot(h, w_ref[1, :, :],
                preferred_element_type=jnp.float32) + b_ref[1:2, :]
    h = _leaky_silu(h)
    # layer 3: grouped conv (4->4 per group), block-diag (4Z, 4Z)
    h = jnp.dot(h, w_ref[2, :, :],
                preferred_element_type=jnp.float32) + b_ref[2:3, :]
    h = _leaky_silu(h)
    # layer 4: grouped conv (4->1 per group), block-diag (4Z, Z)
    h = jnp.dot(h, w_ref[3, :, :Z],
                preferred_element_type=jnp.float32) + b_ref[3:4, :Z]

    # BatchNorm1d(z_dim, affine=False), training mode: biased batch statistics
    mean = jnp.mean(h, axis=0, keepdims=True)              # (1, Z)
    c = h - mean                                           # centered, reused
    var = jnp.mean(c * c, axis=0, keepdims=True)           # (1, Z)
    out_ref[...] = c * lax.rsqrt(var + BN_EPS)


def _expand_block_diagonal(c1w, c2w, c3w, c4w, z_dim):
    """Expand grouped 1x1-conv weights into dense block-diagonal matmul weights
    laid out for plain `x @ W` (no transposed contraction in the kernel)."""
    r = HIDDEN_RATIO
    eye = jnp.eye(z_dim, dtype=jnp.float32)
    w1 = c1w.reshape(z_dim, r)                                     # [d, out_k]
    w2 = jnp.transpose(c2w.reshape(z_dim, r, r), (0, 2, 1))        # [d, in_j, out_k]
    w3 = jnp.transpose(c3w.reshape(z_dim, r, r), (0, 2, 1))        # [d, in_j, out_k]
    w4 = c4w.reshape(z_dim, r)                                     # [d, in_j]
    W1 = (eye[:, :, None] * w1[None, :, :]).reshape(z_dim, z_dim * r)
    W2 = (eye[:, None, :, None] * w2[:, :, None, :]).reshape(z_dim * r, z_dim * r)
    W3 = (eye[:, None, :, None] * w3[:, :, None, :]).reshape(z_dim * r, z_dim * r)
    W4 = (eye[:, None, :] * w4[:, :, None]).reshape(z_dim * r, z_dim)
    return W1, W2, W3, W4


def pack_params(params, z_dim):
    """One-time (per-params) prep: expand block-diagonal weights and pack
    everything into one (4, H, H) weight buffer + one (4, H) bias buffer."""
    c1w, c1b, c2w, c2b, c3w, c3b, c4w, c4b = params
    r = HIDDEN_RATIO
    H = z_dim * r
    c1w, c2w, c3w, c4w = (a.astype(jnp.float32) for a in (c1w, c2w, c3w, c4w))
    W1, W2, W3, W4 = _expand_block_diagonal(c1w, c2w, c3w, c4w, z_dim)

    w_packed = jnp.zeros((4, H, H), jnp.float32)
    w_packed = w_packed.at[0, :z_dim, :].set(W1)
    w_packed = w_packed.at[1, :, :].set(W2)
    w_packed = w_packed.at[2, :, :].set(W3)
    w_packed = w_packed.at[3, :, :z_dim].set(W4)

    b_packed = jnp.zeros((4, H), jnp.float32)
    b_packed = b_packed.at[0, :].set(c1b.reshape(H).astype(jnp.float32))
    b_packed = b_packed.at[1, :].set(c2b.reshape(H).astype(jnp.float32))
    b_packed = b_packed.at[2, :].set(c3b.reshape(H).astype(jnp.float32))
    b_packed = b_packed.at[3, :z_dim].set(c4b.reshape(z_dim).astype(jnp.float32))
    return w_packed, b_packed


@jax.jit
def factorized_neural_sampler_forward(eps, w_packed, b_packed):
    """Forward pass on pre-packed params (pack_params done once, off hot path)."""
    B, Z = eps.shape
    return pl.pallas_call(
        factorized_sampler_kernel,
        out_shape=jax.ShapeDtypeStruct((B, Z), jnp.float32),
        in_specs=[
            pl.BlockSpec(memory_space=pltpu.MemorySpace.VMEM),
            pl.BlockSpec(memory_space=pltpu.MemorySpace.VMEM),
            pl.BlockSpec(memory_space=pltpu.MemorySpace.VMEM),
        ],
        out_specs=pl.BlockSpec(memory_space=pltpu.MemorySpace.VMEM),
    )(eps.astype(jnp.float32), w_packed, b_packed)


def reference(eps, params):
    """Pure-JAX reference mirroring the grouped-conv semantics directly."""
    c1w, c1b, c2w, c2b, c3w, c3b, c4w, c4b = params
    B, Z = eps.shape
    r = HIDDEN_RATIO

    def act(x):
        return (1.0 - NEG_SLOPE) * x * jax.nn.sigmoid(x) + NEG_SLOPE * x

    h = eps[:, :, None] * c1w.reshape(Z, r)[None] + c1b.reshape(Z, r)[None]   # (B,Z,r)
    h = act(h)
    h = jnp.einsum('bdj,dkj->bdk', h, c2w.reshape(Z, r, r)) + c2b.reshape(Z, r)[None]
    h = act(h)
    h = jnp.einsum('bdj,dkj->bdk', h, c3w.reshape(Z, r, r)) + c3b.reshape(Z, r)[None]
    h = act(h)
    h = jnp.einsum('bdj,dj->bd', h, c4w.reshape(Z, r)) + c4b[None, :]          # (B,Z)
    mean = jnp.mean(h, axis=0, keepdims=True)
    var = jnp.mean((h - mean) ** 2, axis=0, keepdims=True)
    return (h - mean) / jnp.sqrt(var + BN_EPS)


if __name__ == "__main__":
    batch_size = 8
    z_dim = 16
    r = HIDDEN_RATIO
    H = z_dim * r

    key = jax.random.PRNGKey(0)
    k_eps, k1w, k1b, k2w, k2b, k3w, k3b, k4w, k4b = jax.random.split(key, 9)

    # eps = torch.randn(batch_size, z_dim)  (drawn on host, passed into kernel)
    eps = jax.random.normal(k_eps, (batch_size, z_dim), jnp.float32)

    # Conv1d weights in PyTorch layout (out_channels, in_channels/groups, 1)
    b1_bound = 1.0                    # fan_in = 1
    bg_bound = 1.0 / (r ** 0.5)       # fan_in = 4
    c1w = jax.random.uniform(k1w, (H, 1, 1), jnp.float32, -b1_bound, b1_bound)
    c1b = jax.random.uniform(k1b, (H,), jnp.float32, -b1_bound, b1_bound)
    c2w = jax.random.uniform(k2w, (H, r, 1), jnp.float32, -bg_bound, bg_bound)
    c2b = jax.random.uniform(k2b, (H,), jnp.float32, -bg_bound, bg_bound)
    c3w = jax.random.uniform(k3w, (H, r, 1), jnp.float32, -bg_bound, bg_bound)
    c3b = jax.random.uniform(k3b, (H,), jnp.float32, -bg_bound, bg_bound)
    c4w = jax.random.uniform(k4w, (z_dim, r, 1), jnp.float32, -bg_bound, bg_bound)
    c4b = jax.random.uniform(k4b, (z_dim,), jnp.float32, -bg_bound, bg_bound)

    params = (c1w, c1b, c2w, c2b, c3w, c3b, c4w, c4b)

    # One-time weight prep (off the per-call hot path); forward is jitted.
    w_packed, b_packed = pack_params(params, z_dim)
    w_packed, b_packed = jax.block_until_ready((w_packed, b_packed))

    out = factorized_neural_sampler_forward(eps, w_packed, b_packed)
    out = jax.block_until_ready(out)

    ref = reference(eps, params)
    assert out.shape == (batch_size, z_dim)
    assert jnp.allclose(out, ref, atol=2e-4, rtol=2e-4), "mismatch vs reference"

    print("KERNEL_OK")
</pallas_src>

<mosaic_0001>
module attributes {stable_mosaic.version = 11 : i64} {
  func.func @factorized_sampler_kernel(%arg0: memref<8x16xf32, #tpu.memory_space<vmem>>, %arg1: memref<4x64x64xf32, #tpu.memory_space<vmem>>, %arg2: memref<4x64xf32, #tpu.memory_space<vmem>>, %arg3: memref<8x16xf32, #tpu.memory_space<vmem>>) attributes {dimension_semantics = [], scalar_prefetch = 0 : i64, scratch_operands = 0 : i64, tpu.core_type = #tpu.core_type<tc>} {
    %c0 = arith.constant 0 : index
    %c0_0 = arith.constant 0 : index
    %0 = vector.load %arg0[%c0, %c0_0] : memref<8x16xf32, #tpu.memory_space<vmem>>, vector<8x16xf32>
    %c0_1 = arith.constant 0 : index
    %c0_2 = arith.constant 0 : index
    %c0_3 = arith.constant 0 : index
    %1 = vector.load %arg1[%c0_1, %c0_2, %c0_3] : memref<4x64x64xf32, #tpu.memory_space<vmem>>, vector<1x16x64xf32>
    %2 = vector.shape_cast %1 : vector<1x16x64xf32> to vector<16x64xf32>
    %cst = arith.constant dense<0.000000e+00> : vector<8x64xf32>
    %3 = tpu.matmul %0, %2, %cst {dimension_numbers = #tpu.dot_dimension_numbers<[1], [0], [0], [1], [0, 0, 1, 1], [], []>} : vector<8x16xf32>, vector<16x64xf32>, vector<8x64xf32> -> vector<8x64xf32>
    %c0_4 = arith.constant 0 : index
    %c0_5 = arith.constant 0 : index
    %4 = vector.load %arg2[%c0_4, %c0_5] : memref<4x64xf32, #tpu.memory_space<vmem>>, vector<1x64xf32>
    %5 = vector.broadcast %4 : vector<1x64xf32> to vector<8x64xf32>
    %6 = arith.addf %3, %5 : vector<8x64xf32>
    %7 = arith.negf %6 : vector<8x64xf32>
    %8 = math.exp %7 : vector<8x64xf32>
    %cst_6 = arith.constant 1.000000e+00 : f32
    %9 = vector.broadcast %cst_6 : f32 to vector<8x64xf32>
    %10 = arith.addf %9, %8 : vector<8x64xf32>
    %11 = arith.divf %9, %10 : vector<8x64xf32>
    %cst_7 = arith.constant 8.000000e-01 : f32
    %12 = vector.broadcast %cst_7 : f32 to vector<8x64xf32>
    %13 = arith.mulf %12, %11 : vector<8x64xf32>
    %cst_8 = arith.constant 2.000000e-01 : f32
    %14 = vector.broadcast %cst_8 : f32 to vector<8x64xf32>
    %15 = arith.addf %14, %13 : vector<8x64xf32>
    %16 = arith.mulf %6, %15 : vector<8x64xf32>
    %c1 = arith.constant 1 : index
    %c0_9 = arith.constant 0 : index
    %c0_10 = arith.constant 0 : index
    %17 = vector.load %arg1[%c1, %c0_9, %c0_10] : memref<4x64x64xf32, #tpu.memory_space<vmem>>, vector<1x64x64xf32>
    %18 = vector.shape_cast %17 : vector<1x64x64xf32> to vector<64x64xf32>
    %cst_11 = arith.constant dense<0.000000e+00> : vector<8x64xf32>
    %19 = tpu.matmul %16, %18, %cst_11 {dimension_numbers = #tpu.dot_dimension_numbers<[1], [0], [0], [1], [0, 0, 1, 1], [], []>} : vector<8x64xf32>, vector<64x64xf32>, vector<8x64xf32> -> vector<8x64xf32>
    %c1_12 = arith.constant 1 : index
    %c0_13 = arith.constant 0 : index
    %20 = vector.load %arg2[%c1_12, %c0_13] : memref<4x64xf32, #tpu.memory_space<vmem>>, vector<1x64xf32>
    %21 = vector.broadcast %20 : vector<1x64xf32> to vector<8x64xf32>
    %22 = arith.addf %19, %21 : vector<8x64xf32>
    %23 = arith.negf %22 : vector<8x64xf32>
    %24 = math.exp %23 : vector<8x64xf32>
    %cst_14 = arith.constant 1.000000e+00 : f32
    %25 = vector.broadcast %cst_14 : f32 to vector<8x64xf32>
    %26 = arith.addf %25, %24 : vector<8x64xf32>
    %27 = arith.divf %25, %26 : vector<8x64xf32>
    %cst_15 = arith.constant 8.000000e-01 : f32
    %28 = vector.broadcast %cst_15 : f32 to vector<8x64xf32>
    %29 = arith.mulf %28, %27 : vector<8x64xf32>
    %cst_16 = arith.constant 2.000000e-01 : f32
    %30 = vector.broadcast %cst_16 : f32 to vector<8x64xf32>
    %31 = arith.addf %30, %29 : vector<8x64xf32>
    %32 = arith.mulf %22, %31 : vector<8x64xf32>
    %c2 = arith.constant 2 : index
    %c0_17 = arith.constant 0 : index
    %c0_18 = arith.constant 0 : index
    %33 = vector.load %arg1[%c2, %c0_17, %c0_18] : memref<4x64x64xf32, #tpu.memory_space<vmem>>, vector<1x64x64xf32>
    %34 = vector.shape_cast %33 : vector<1x64x64xf32> to vector<64x64xf32>
    %cst_19 = arith.constant dense<0.000000e+00> : vector<8x64xf32>
    %35 = tpu.matmul %32, %34, %cst_19 {dimension_numbers = #tpu.dot_dimension_numbers<[1], [0], [0], [1], [0, 0, 1, 1], [], []>} : vector<8x64xf32>, vector<64x64xf32>, vector<8x64xf32> -> vector<8x64xf32>
    %c2_20 = arith.constant 2 : index
    %c0_21 = arith.constant 0 : index
    %36 = vector.load %arg2[%c2_20, %c0_21] : memref<4x64xf32, #tpu.memory_space<vmem>>, vector<1x64xf32>
    %37 = vector.broadcast %36 : vector<1x64xf32> to vector<8x64xf32>
    %38 = arith.addf %35, %37 : vector<8x64xf32>
    %39 = arith.negf %38 : vector<8x64xf32>
    %40 = math.exp %39 : vector<8x64xf32>
    %cst_22 = arith.constant 1.000000e+00 : f32
    %41 = vector.broadcast %cst_22 : f32 to vector<8x64xf32>
    %42 = arith.addf %41, %40 : vector<8x64xf32>
    %43 = arith.divf %41, %42 : vector<8x64xf32>
    %cst_23 = arith.constant 8.000000e-01 : f32
    %44 = vector.broadcast %cst_23 : f32 to vector<8x64xf32>
    %45 = arith.mulf %44, %43 : vector<8x64xf32>
    %cst_24 = arith.constant 2.000000e-01 : f32
    %46 = vector.broadcast %cst_24 : f32 to vector<8x64xf32>
    %47 = arith.addf %46, %45 : vector<8x64xf32>
    %48 = arith.mulf %38, %47 : vector<8x64xf32>
    %c3 = arith.constant 3 : index
    %c0_25 = arith.constant 0 : index
    %c0_26 = arith.constant 0 : index
    %49 = vector.load %arg1[%c3, %c0_25, %c0_26] : memref<4x64x64xf32, #tpu.memory_space<vmem>>, vector<1x64x16xf32>
    %50 = vector.shape_cast %49 : vector<1x64x16xf32> to vector<64x16xf32>
    %cst_27 = arith.constant dense<0.000000e+00> : vector<8x16xf32>
    %51 = tpu.matmul %48, %50, %cst_27 {dimension_numbers = #tpu.dot_dimension_numbers<[1], [0], [0], [1], [0, 0, 1, 1], [], []>} : vector<8x64xf32>, vector<64x16xf32>, vector<8x16xf32> -> vector<8x16xf32>
    %c3_28 = arith.constant 3 : index
    %c0_29 = arith.constant 0 : index
    %52 = vector.load %arg2[%c3_28, %c0_29] : memref<4x64xf32, #tpu.memory_space<vmem>>, vector<1x16xf32>
    %53 = vector.broadcast %52 : vector<1x16xf32> to vector<8x16xf32>
    %54 = arith.addf %51, %53 : vector<8x16xf32>
    %cst_30 = arith.constant dense<0.000000e+00> : vector<16xf32>
    %55 = vector.multi_reduction <add>, %54, %cst_30 [0] : vector<8x16xf32> to vector<16xf32>
    %56 = vector.shape_cast %55 : vector<16xf32> to vector<1x16xf32>
    %cst_31 = arith.constant 8.000000e+00 : f32
    %57 = vector.broadcast %cst_31 : f32 to vector<1x16xf32>
    %58 = arith.divf %56, %57 : vector<1x16xf32>
    %59 = vector.broadcast %58 : vector<1x16xf32> to vector<8x16xf32>
    %60 = arith.subf %54, %59 : vector<8x16xf32>
    %61 = arith.mulf %60, %60 : vector<8x16xf32>
    %cst_32 = arith.constant dense<0.000000e+00> : vector<16xf32>
    %62 = vector.multi_reduction <add>, %61, %cst_32 [0] : vector<8x16xf32> to vector<16xf32>
    %63 = vector.shape_cast %62 : vector<16xf32> to vector<1x16xf32>
    %cst_33 = arith.constant 8.000000e+00 : f32
    %64 = vector.broadcast %cst_33 : f32 to vector<1x16xf32>
    %65 = arith.divf %63, %64 : vector<1x16xf32>
    %cst_34 = arith.constant 9.99999974E-6 : f32
    %66 = vector.broadcast %cst_34 : f32 to vector<1x16xf32>
    %67 = arith.addf %65, %66 : vector<1x16xf32>
    %68 = math.rsqrt %67 : vector<1x16xf32>
    %69 = vector.broadcast %68 : vector<1x16xf32> to vector<8x16xf32>
    %70 = arith.mulf %60, %69 : vector<8x16xf32>
    %c0_35 = arith.constant 0 : index
    %c0_36 = arith.constant 0 : index
    %71 = vector.load %arg3[%c0_35, %c0_36] : memref<8x16xf32, #tpu.memory_space<vmem>>, vector<8x16xf32>
    tpu.vector_store %arg3[%c0_35, %c0_36], %70 {strides = array<i32>} : memref<8x16xf32, #tpu.memory_space<vmem>>, vector<8x16xf32>,
    return
  }
}

</mosaic_0001>

<llo_original>
// kernel: factorized_neural_sampler_forward.1
$region0: #{factorized_neural_sampler_forward.1}
  #allocation0 [shape = 'u32[]', space=smem, size = 0x4, offset = 0x4, fixed_abs, tag = 'smem constant byte address 0x4 - core index']
  #allocation1 [shape = 'u32[144,128]{1,0:T(1,128)}', space=vmem, size = 0x12000, scoped, tag = 'internal scratch']
  %s0 = inlined_call_operand.hbm [shape: f32[8,16], index: 0, kind: input, shape index: {}]
  %s1 = inlined_call_operand.hbm [shape: f32[4,64,64], index: 1, kind: input, shape index: {}]
  %s2 = inlined_call_operand.hbm [shape: f32[4,64], index: 2, kind: input, shape index: {}]
  %s3 = inlined_call_operand.hbm [shape: f32[8,16], index: 3, kind: output, shape index: {}]
  %s4 = sld [smem:[#allocation0]]
  $region34: #{factorized_neural_sampler_forward.1} parent=0
    _
  %s6 = ssub.s32 1, %s4
  %s7 = scalar_select 0, %s6, %s4
  $region1: #{factorized_neural_sampler_forward.1} parent=0
    #allocation2 [shape = 'u8[4096]{0}', space=vmem, size = 0x1000, scoped, tag = 'input window, operand 0, single buffered']
    #allocation3 [shape = 's32[1]{0}', space=sflag, size = 0x4, scoped, tag = 'scoped memory for factorized_neural_sampler_forward.1']
    #allocation4 [shape = 's32[1]{0}', space=sflag, size = 0x4, scoped, tag = 'scoped memory for factorized_neural_sampler_forward.1']
    #allocation5 [shape = 'u8[131072]{0}', space=vmem, size = 0x20000, scoped, tag = 'input window, operand 1, single buffered']
    #allocation6 [shape = 's32[1]{0}', space=sflag, size = 0x4, scoped, tag = 'scoped memory for factorized_neural_sampler_forward.1']
    #allocation7 [shape = 'u8[2048]{0}', space=vmem, size = 0x800, scoped, tag = 'input window, operand 2, single buffered']
    #allocation8 [shape = 'u8[4096]{0}', space=vmem, size = 0x1000, scoped, tag = 'output window, operand 0, single buffered']
    %8 = vsyncpa [#allocation3], 0
    %9 = vsyncpa [#allocation6], 0
    %10 = vsyncpa [#allocation4], 0
    // Predicated region
    $region2: #{factorized_neural_sampler_forward.1} parent=1 // pred_check
      _
    $region3: #{factorized_neural_sampler_forward.1} parent=1 // pred_check_branch
      %12 = sbr.rel (0) target = $region5
    $region4: #{factorized_neural_sampler_forward.1} parent=1 // pred_region
      %s14 = ssub.s32 128, 128
      %15 = vsyncadd [#allocation3], %s14
      %s17 = sshll.u32 [#allocation2], 4
      %s18 = int_to_ptr.vmem [resolvable:$true] %s17
      %20 = dma.hbm_to_vmem [thread:$0]  %s0, 128, %s18, [#allocation3]
    $region5: #{factorized_neural_sampler_forward.1} parent=1 // pred_fallthru
      _
    // Predicated region
    $region6: #{factorized_neural_sampler_forward.1} parent=1 // pred_check
      _
    $region7: #{factorized_neural_sampler_forward.1} parent=1 // pred_check_branch
      %22 = sbr.rel (0) target = $region9
    $region8: #{factorized_neural_sampler_forward.1} parent=1 // pred_region
      %s24 = ssub.s32 4096, 4096
      %25 = vsyncadd [#allocation6], %s24
      %s26 = sshll.u32 [#allocation5], 4
      %s27 = int_to_ptr.vmem [resolvable:$true] %s26
      %32 = dma.hbm_to_vmem [thread:$0]  %s1, 4096, %s27, [#allocation6], 128, 128, 8
    $region9: #{factorized_neural_sampler_forward.1} parent=1 // pred_fallthru
      _
    // Predicated region
    $region10: #{factorized_neural_sampler_forward.1} parent=1 // pred_check
      _
    $region11: #{factorized_neural_sampler_forward.1} parent=1 // pred_check_branch
      %34 = sbr.rel (0) target = $region13
    $region12: #{factorized_neural_sampler_forward.1} parent=1 // pred_region
      %s36 = ssub.s32 64, 64
      %37 = vsyncadd [#allocation6], %s36
      %s39 = sshll.u32 [#allocation7], 4
      %s40 = int_to_ptr.vmem [resolvable:$true] %s39
      %42 = dma.hbm_to_vmem [thread:$0]  %s2, 64, %s40, [#allocation6]
    $region13: #{factorized_neural_sampler_forward.1} parent=1 // pred_fallthru
      _
    // Predicated region
    $region14: #{factorized_neural_sampler_forward.1} parent=1 // pred_check
      _
    $region15: #{factorized_neural_sampler_forward.1} parent=1 // pred_check_branch
      %44 = sbr.rel (0) target = $region17
    $region16: #{factorized_neural_sampler_forward.1} parent=1 // pred_region
      %45 = dma.done [#allocation3], 128
    $region17: #{factorized_neural_sampler_forward.1} parent=1 // pred_fallthru
      _
    // Predicated region
    $region18: #{factorized_neural_sampler_forward.1} parent=1 // pred_check
      _
    $region19: #{factorized_neural_sampler_forward.1} parent=1 // pred_check_branch
      %47 = sbr.rel (0) target = $region21
    $region20: #{factorized_neural_sampler_forward.1} parent=1 // pred_region
      %48 = dma.done [#allocation6], 4096
    $region21: #{factorized_neural_sampler_forward.1} parent=1 // pred_fallthru
      _
    // Predicated region
    $region22: #{factorized_neural_sampler_forward.1} parent=1 // pred_check
      _
    $region23: #{factorized_neural_sampler_forward.1} parent=1 // pred_check_branch
      %50 = sbr.rel (0) target = $region25
    $region24: #{factorized_neural_sampler_forward.1} parent=1 // pred_region
      %51 = dma.done [#allocation6], 64
    $region25: #{factorized_neural_sampler_forward.1} parent=1 // pred_fallthru
      _
    %v52 = vld [vmem:[#allocation2] sm:$0xff]
    %v53 = vld [vmem:[#allocation5] sm:$0xff]
    %v54 = vld [vmem:[#allocation5 + $0x8] sm:$0xff]
    %v55 = vld [vmem:[#allocation7] sm:$0x1]
    %v56 = vlaneseq
    %v57 = vshrl.u32 %v56, 7
    %v58 = vsub.s32 0, %v57
    %v59 = vrot.slane %v55, %v58
    %vm60 = vcmask 130048
    %v62 = vsel %vm60, %v52, 0
    %64 = vmatprep.subr.mxu0 0.0
    %65 = vmatpush1.msra.mxu0 0.0
    %66 = vmatprep.subr.mxu0 0.0
    %67 = vmatpush1.msra.mxu0 0.0
    %68 = vmatprep.subr.mxu0 0.0
    %69 = vmatpush1.msra.mxu0 0.0
    %70 = vmatprep.subr.mxu0 0.0
    %71 = vmatpush1.msra.mxu0 0.0
    %72 = vmatprep.subr.mxu0 0.0
    %73 = vmatpush1.msra.mxu0 0.0
    %74 = vmatprep.subr.mxu0 0.0
    %75 = vmatpush1.msra.mxu0 0.0
    %76 = vmatprep.subr.mxu0 0.0
    %77 = vmatpush1.msra.mxu0 0.0
    %78 = vmatprep.subr.mxu0 0.0
    %79 = vmatpush1.msra.mxu0 0.0
    %80 = vmatprep.subr.mxu0 0.0
    %81 = vmatpush1.msra.mxu0 0.0
    %82 = vmatprep.subr.mxu0 0.0
    %83 = vmatpush1.msra.mxu0 0.0
    %84 = vmatprep.subr.mxu0 0.0
    %85 = vmatpush1.msra.mxu0 0.0
    %86 = vmatprep.subr.mxu0 0.0
    %87 = vmatpush1.msra.mxu0 0.0
    %88 = vmatprep.subr.mxu0 0.0
    %89 = vmatpush1.msra.mxu0 0.0
    %90 = vmatprep.subr.mxu0 0.0
    %91 = vmatpush1.msra.mxu0 0.0
    %92 = vmatprep.subr.mxu0 0.0
    %93 = vmatpush1.msra.mxu0 %v54
    %94 = vmatprep.subr.mxu0 0.0
    %95 = vmatpush1.msra.mxu0 %v53
    %96 = vmatprep.subr.mxu0 0.0
    %97 = vmatpush2.msra.mxu0 0.0
    %98 = vmatprep.subr.mxu0 0.0
    %99 = vmatpush2.msra.mxu0 0.0
    %100 = vmatprep.subr.mxu0 0.0
    %101 = vmatpush2.msra.mxu0 0.0
    %102 = vmatprep.subr.mxu0 0.0
    %103 = vmatpush2.msra.mxu0 0.0
    %104 = vmatprep.subr.mxu0 0.0
    %105 = vmatpush2.msra.mxu0 0.0
    %106 = vmatprep.subr.mxu0 0.0
    %107 = vmatpush2.msra.mxu0 0.0
    %108 = vmatprep.subr.mxu0 0.0
    %109 = vmatpush2.msra.mxu0 0.0
    %110 = vmatprep.subr.mxu0 0.0
    %111 = vmatpush2.msra.mxu0 0.0
    %112 = vmatprep.subr.mxu0 0.0
    %113 = vmatpush2.msra.mxu0 0.0
    %114 = vmatprep.subr.mxu0 0.0
    %115 = vmatpush2.msra.mxu0 0.0
    %116 = vmatprep.subr.mxu0 0.0
    %117 = vmatpush2.msra.mxu0 0.0
    %118 = vmatprep.subr.mxu0 0.0
    %119 = vmatpush2.msra.mxu0 0.0
    %120 = vmatprep.subr.mxu0 0.0
    %121 = vmatpush2.msra.mxu0 0.0
    %122 = vmatprep.subr.mxu0 0.0
    %123 = vmatpush2.msra.mxu0 0.0
    %124 = vmatprep.subr.mxu0 0.0
    %125 = vmatpush2.msra.mxu0 0.0
    %126 = vmatprep.subr.mxu0 0.0
    %127 = vmatpush2.msra.mxu0 0.0
    %128 = vmatprep.mubr.f32.mxu0 0.0
    %129 = vmatmul.mubr.f32.gmra.mxu0 %v62
    %v130 = vpop.f32.mrf.mxu0
    %v131 = vadd.f32 %v59, %v130
    %v132 = vpop.f32.mrf.mxu0
    %133 = vdwg.mxu0
    %v134 = vxor.u32 %v131, 2147483648
    %v135 = vmul.f32 %v134, 1.442695
    %v136 = vpow.pop %v135
    %v137 = vadd.f32 %v136, 1.0
    %v138 = vrcp.pop %v137
    %v139 = vmul.f32 1.0, %v138
    %v140 = vmul.f32 %v139, 0.8
    %v141 = vadd.f32 %v140, 0.2
    %v142 = vmul.f32 %v131, %v141
    %s143 = scalar_lea.vmem [#allocation5], 64
    %v144 = vld [vmem:[%s143] sm:$0xff]
    %v145 = vld [vmem:[%s143 + $0x8] sm:$0xff]
    %v146 = vld [vmem:[%s143 + $0x10] sm:$0xff]
    %v147 = vld [vmem:[%s143 + $0x18] sm:$0xff]
    %v148 = vld [vmem:[%s143 + $0x20] sm:$0xff]
    %v149 = vld [vmem:[%s143 + $0x28] sm:$0xff]
    %v150 = vld [vmem:[%s143 + $0x30] sm:$0xff]
    %v151 = vld [vmem:[%s143 + $0x38] sm:$0xff]
    %v152 = vld [vmem:[#allocation7 + $0x1] sm:$0x1]
    %v153 = vlaneseq
    %v154 = vshrl.u32 %v153, 7
    %v155 = vsub.s32 0, %v154
    %v156 = vrot.slane %v152, %v155
    %vm157 = vcmask 523264
    %v159 = vsel %vm157, %v142, 0
    %161 = vmatprep.subr.mxu0 0.0
    %162 = vmatpush1.msra.mxu0 0.0
    %163 = vmatprep.subr.mxu0 0.0
    %164 = vmatpush1.msra.mxu0 0.0
    %165 = vmatprep.subr.mxu0 0.0
    %166 = vmatpush1.msra.mxu0 0.0
    %167 = vmatprep.subr.mxu0 0.0
    %168 = vmatpush1.msra.mxu0 0.0
    %169 = vmatprep.subr.mxu0 0.0
    %170 = vmatpush1.msra.mxu0 0.0
    %171 = vmatprep.subr.mxu0 0.0
    %172 = vmatpush1.msra.mxu0 0.0
    %173 = vmatprep.subr.mxu0 0.0
    %174 = vmatpush1.msra.mxu0 0.0
    %175 = vmatprep.subr.mxu0 0.0
    %176 = vmatpush1.msra.mxu0 0.0
    %177 = vmatprep.subr.mxu0 0.0
    %178 = vmatpush1.msra.mxu0 %v151
    %179 = vmatprep.subr.mxu0 0.0
    %180 = vmatpush1.msra.mxu0 %v150
    %181 = vmatprep.subr.mxu0 0.0
    %182 = vmatpush1.msra.mxu0 %v149
    %183 = vmatprep.subr.mxu0 0.0
    %184 = vmatpush1.msra.mxu0 %v148
    %185 = vmatprep.subr.mxu0 0.0
    %186 = vmatpush1.msra.mxu0 %v147
    %187 = vmatprep.subr.mxu0 0.0
    %188 = vmatpush1.msra.mxu0 %v146
    %189 = vmatprep.subr.mxu0 0.0
    %190 = vmatpush1.msra.mxu0 %v145
    %191 = vmatprep.subr.mxu0 0.0
    %192 = vmatpush1.msra.mxu0 %v144
    %193 = vmatprep.subr.mxu0 0.0
    %194 = vmatpush2.msra.mxu0 0.0
    %195 = vmatprep.subr.mxu0 0.0
    %196 = vmatpush2.msra.mxu0 0.0
    %197 = vmatprep.subr.mxu0 0.0
    %198 = vmatpush2.msra.mxu0 0.0
    %199 = vmatprep.subr.mxu0 0.0
    %200 = vmatpush2.msra.mxu0 0.0
    %201 = vmatprep.subr.mxu0 0.0
    %202 = vmatpush2.msra.mxu0 0.0
    %203 = vmatprep.subr.mxu0 0.0
    %204 = vmatpush2.msra.mxu0 0.0
    %205 = vmatprep.subr.mxu0 0.0
    %206 = vmatpush2.msra.mxu0 0.0
    %207 = vmatprep.subr.mxu0 0.0
    %208 = vmatpush2.msra.mxu0 0.0
    %209 = vmatprep.subr.mxu0 0.0
    %210 = vmatpush2.msra.mxu0 0.0
    %211 = vmatprep.subr.mxu0 0.0
    %212 = vmatpush2.msra.mxu0 0.0
    %213 = vmatprep.subr.mxu0 0.0
    %214 = vmatpush2.msra.mxu0 0.0
    %215 = vmatprep.subr.mxu0 0.0
    %216 = vmatpush2.msra.mxu0 0.0
    %217 = vmatprep.subr.mxu0 0.0
    %218 = vmatpush2.msra.mxu0 0.0
    %219 = vmatprep.subr.mxu0 0.0
    %220 = vmatpush2.msra.mxu0 0.0
    %221 = vmatprep.subr.mxu0 0.0
    %222 = vmatpush2.msra.mxu0 0.0
    %223 = vmatprep.subr.mxu0 0.0
    %224 = vmatpush2.msra.mxu0 0.0
    %225 = vmatprep.mubr.f32.mxu0 0.0
    %226 = vmatmul.mubr.f32.gmra.mxu0 %v159
    %v227 = vpop.f32.mrf.mxu0
    %v228 = vadd.f32 %v156, %v227
    %v229 = vpop.f32.mrf.mxu0
    %230 = vdwg.mxu0
    %v231 = vxor.u32 %v228, 2147483648
    %v232 = vmul.f32 %v231, 1.442695
    %v233 = vpow.pop %v232
    %v234 = vadd.f32 %v233, 1.0
    %v235 = vrcp.pop %v234
    %v236 = vmul.f32 1.0, %v235
    %v237 = vmul.f32 %v236, 0.8
    %v238 = vadd.f32 %v237, 0.2
    %v239 = vmul.f32 %v228, %v238
    %s240 = scalar_lea.vmem [#allocation5], 128
    %v241 = vld [vmem:[%s240] sm:$0xff]
    %v242 = vld [vmem:[%s240 + $0x8] sm:$0xff]
    %v243 = vld [vmem:[%s240 + $0x10] sm:$0xff]
    %v244 = vld [vmem:[%s240 + $0x18] sm:$0xff]
    %v245 = vld [vmem:[%s240 + $0x20] sm:$0xff]
    %v246 = vld [vmem:[%s240 + $0x28] sm:$0xff]
    %v247 = vld [vmem:[%s240 + $0x30] sm:$0xff]
    %v248 = vld [vmem:[%s240 + $0x38] sm:$0xff]
    %v249 = vld [vmem:[#allocation7 + $0x2] sm:$0x1]
    %v250 = vlaneseq
    %v251 = vshrl.u32 %v250, 7
    %v252 = vsub.s32 0, %v251
    %v253 = vrot.slane %v249, %v252
    %v255 = vsel %vm157, %v239, 0
    %257 = vmatprep.subr.mxu0 0.0
    %258 = vmatpush1.msra.mxu0 0.0
    %259 = vmatprep.subr.mxu0 0.0
    %260 = vmatpush1.msra.mxu0 0.0
    %261 = vmatprep.subr.mxu0 0.0
    %262 = vmatpush1.msra.mxu0 0.0
    %263 = vmatprep.subr.mxu0 0.0
    %264 = vmatpush1.msra.mxu0 0.0
    %265 = vmatprep.subr.mxu0 0.0
    %266 = vmatpush1.msra.mxu0 0.0
    %267 = vmatprep.subr.mxu0 0.0
    %268 = vmatpush1.msra.mxu0 0.0
    %269 = vmatprep.subr.mxu0 0.0
    %270 = vmatpush1.msra.mxu0 0.0
    %271 = vmatprep.subr.mxu0 0.0
    %272 = vmatpush1.msra.mxu0 0.0
    %273 = vmatprep.subr.mxu0 0.0
    %274 = vmatpush1.msra.mxu0 %v248
    %275 = vmatprep.subr.mxu0 0.0
    %276 = vmatpush1.msra.mxu0 %v247
    %277 = vmatprep.subr.mxu0 0.0
    %278 = vmatpush1.msra.mxu0 %v246
    %279 = vmatprep.subr.mxu0 0.0
    %280 = vmatpush1.msra.mxu0 %v245
    %281 = vmatprep.subr.mxu0 0.0
    %282 = vmatpush1.msra.mxu0 %v244
    %283 = vmatprep.subr.mxu0 0.0
    %284 = vmatpush1.msra.mxu0 %v243
    %285 = vmatprep.subr.mxu0 0.0
    %286 = vmatpush1.msra.mxu0 %v242
    %287 = vmatprep.subr.mxu0 0.0
    %288 = vmatpush1.msra.mxu0 %v241
    %289 = vmatprep.subr.mxu0 0.0
    %290 = vmatpush2.msra.mxu0 0.0
    %291 = vmatprep.subr.mxu0 0.0
    %292 = vmatpush2.msra.mxu0 0.0
    %293 = vmatprep.subr.mxu0 0.0
    %294 = vmatpush2.msra.mxu0 0.0
    %295 = vmatprep.subr.mxu0 0.0
    %296 = vmatpush2.msra.mxu0 0.0
    %297 = vmatprep.subr.mxu0 0.0
    %298 = vmatpush2.msra.mxu0 0.0
    %299 = vmatprep.subr.mxu0 0.0
    %300 = vmatpush2.msra.mxu0 0.0
    %301 = vmatprep.subr.mxu0 0.0
    %302 = vmatpush2.msra.mxu0 0.0
    %303 = vmatprep.subr.mxu0 0.0
    %304 = vmatpush2.msra.mxu0 0.0
    %305 = vmatprep.subr.mxu0 0.0
    %306 = vmatpush2.msra.mxu0 0.0
    %307 = vmatprep.subr.mxu0 0.0
    %308 = vmatpush2.msra.mxu0 0.0
    %309 = vmatprep.subr.mxu0 0.0
    %310 = vmatpush2.msra.mxu0 0.0
    %311 = vmatprep.subr.mxu0 0.0
    %312 = vmatpush2.msra.mxu0 0.0
    %313 = vmatprep.subr.mxu0 0.0
    %314 = vmatpush2.msra.mxu0 0.0
    %315 = vmatprep.subr.mxu0 0.0
    %316 = vmatpush2.msra.mxu0 0.0
    %317 = vmatprep.subr.mxu0 0.0
    %318 = vmatpush2.msra.mxu0 0.0
    %319 = vmatprep.subr.mxu0 0.0
    %320 = vmatpush2.msra.mxu0 0.0
    %321 = vmatprep.mubr.f32.mxu0 0.0
    %322 = vmatmul.mubr.f32.gmra.mxu0 %v255
    %v323 = vpop.f32.mrf.mxu0
    %v324 = vadd.f32 %v253, %v323
    %v325 = vpop.f32.mrf.mxu0
    %326 = vdwg.mxu0
    %v327 = vxor.u32 %v324, 2147483648
    %v328 = vmul.f32 %v327, 1.442695
    %v329 = vpow.pop %v328
    %v330 = vadd.f32 %v329, 1.0
    %v331 = vrcp.pop %v330
    %v332 = vmul.f32 1.0, %v331
    %v333 = vmul.f32 %v332, 0.8
    %v334 = vadd.f32 %v333, 0.2
    %v335 = vmul.f32 %v324, %v334
    %s336 = scalar_lea.vmem [#allocation5], 192
    %v337 = vld [vmem:[%s336] sm:$0xff]
    %v338 = vld [vmem:[%s336 + $0x8] sm:$0xff]
    %v339 = vld [vmem:[%s336 + $0x10] sm:$0xff]
    %v340 = vld [vmem:[%s336 + $0x18] sm:$0xff]
    %v341 = vld [vmem:[%s336 + $0x20] sm:$0xff]
    %v342 = vld [vmem:[%s336 + $0x28] sm:$0xff]
    %v343 = vld [vmem:[%s336 + $0x30] sm:$0xff]
    %v344 = vld [vmem:[%s336 + $0x38] sm:$0xff]
    %v345 = vld [vmem:[#allocation7 + $0x3] sm:$0x1]
    %v346 = vlaneseq
    %v347 = vshrl.u32 %v346, 7
    %v348 = vsub.s32 0, %v347
    %v349 = vrot.slane %v345, %v348
    %v351 = vsel %vm157, %v335, 0
    %353 = vmatprep.subr.mxu0 0.0
    %354 = vmatpush1.msra.mxu0 0.0
    %355 = vmatprep.subr.mxu0 0.0
    %356 = vmatpush1.msra.mxu0 0.0
    %357 = vmatprep.subr.mxu0 0.0
    %358 = vmatpush1.msra.mxu0 0.0
    %359 = vmatprep.subr.mxu0 0.0
    %360 = vmatpush1.msra.mxu0 0.0
    %361 = vmatprep.subr.mxu0 0.0
    %362 = vmatpush1.msra.mxu0 0.0
    %363 = vmatprep.subr.mxu0 0.0
    %364 = vmatpush1.msra.mxu0 0.0
    %365 = vmatprep.subr.mxu0 0.0
    %366 = vmatpush1.msra.mxu0 0.0
    %367 = vmatprep.subr.mxu0 0.0
    %368 = vmatpush1.msra.mxu0 0.0
    %369 = vmatprep.subr.mxu0 0.0
    %370 = vmatpush1.msra.mxu0 %v344
    %371 = vmatprep.subr.mxu0 0.0
    %372 = vmatpush1.msra.mxu0 %v343
    %373 = vmatprep.subr.mxu0 0.0
    %374 = vmatpush1.msra.mxu0 %v342
    %375 = vmatprep.subr.mxu0 0.0
    %376 = vmatpush1.msra.mxu0 %v341
    %377 = vmatprep.subr.mxu0 0.0
    %378 = vmatpush1.msra.mxu0 %v340
    %379 = vmatprep.subr.mxu0 0.0
    %380 = vmatpush1.msra.mxu0 %v339
    %381 = vmatprep.subr.mxu0 0.0
    %382 = vmatpush1.msra.mxu0 %v338
    %383 = vmatprep.subr.mxu0 0.0
    %384 = vmatpush1.msra.mxu0 %v337
    %385 = vmatprep.subr.mxu0 0.0
    %386 = vmatpush2.msra.mxu0 0.0
    %387 = vmatprep.subr.mxu0 0.0
    %388 = vmatpush2.msra.mxu0 0.0
    %389 = vmatprep.subr.mxu0 0.0
    %390 = vmatpush2.msra.mxu0 0.0
    %391 = vmatprep.subr.mxu0 0.0
    %392 = vmatpush2.msra.mxu0 0.0
    %393 = vmatprep.subr.mxu0 0.0
    %394 = vmatpush2.msra.mxu0 0.0
    %395 = vmatprep.subr.mxu0 0.0
    %396 = vmatpush2.msra.mxu0 0.0
    %397 = vmatprep.subr.mxu0 0.0
    %398 = vmatpush2.msra.mxu0 0.0
    %399 = vmatprep.subr.mxu0 0.0
    %400 = vmatpush2.msra.mxu0 0.0
    %401 = vmatprep.subr.mxu0 0.0
    %402 = vmatpush2.msra.mxu0 0.0
    %403 = vmatprep.subr.mxu0 0.0
    %404 = vmatpush2.msra.mxu0 0.0
    %405 = vmatprep.subr.mxu0 0.0
    %406 = vmatpush2.msra.mxu0 0.0
    %407 = vmatprep.subr.mxu0 0.0
    %408 = vmatpush2.msra.mxu0 0.0
    %409 = vmatprep.subr.mxu0 0.0
    %410 = vmatpush2.msra.mxu0 0.0
    %411 = vmatprep.subr.mxu0 0.0
    %412 = vmatpush2.msra.mxu0 0.0
    %413 = vmatprep.subr.mxu0 0.0
    %414 = vmatpush2.msra.mxu0 0.0
    %415 = vmatprep.subr.mxu0 0.0
    %416 = vmatpush2.msra.mxu0 0.0
    %417 = vmatprep.mubr.f32.mxu0 0.0
    %418 = vmatmul.mubr.f32.gmra.mxu0 %v351
    %v419 = vpop.f32.mrf.mxu0
    %v420 = vadd.f32 %v349, %v419
    %v421 = vpop.f32.mrf.mxu0
    %422 = vdwg.mxu0
    %v423 = vsel %vm60, %v420, 0.0
    %v424 = vrot.slane %v423, 4
    %v425 = vadd.f32 %v423, %v424
    %v426 = vrot.slane %v425, 2
    %v427 = vadd.f32 %v425, %v426
    %v428 = vrot.slane %v427, 1
    %v429 = vadd.f32 %v427, %v428
    %v430 = vrcp.pop 8.0
    %v431 = vmul.f32 %v429, %v430
    %v432 = vsub.f32 %v420, %v431
    %v433 = vmul.f32 %v432, %v432
    %v434 = vsel %vm60, %v433, 0.0
    %v435 = vrot.slane %v434, 4
    %v436 = vadd.f32 %v434, %v435
    %v437 = vrot.slane %v436, 2
    %v438 = vadd.f32 %v436, %v437
    %v439 = vrot.slane %v438, 1
    %v440 = vadd.f32 %v438, %v439
    %v441 = vmul.f32 %v440, %v430
    %v442 = vadd.f32 %v441, 1e-05
    %v443 = vrsqrt.pop %v442
    %v444 = vmul.f32 %v432, %v443
    %445 = vst.msk [vmem:[#allocation8] sm:$0xff] %vm60, %v444
    // Predicated region
    $region26: #{factorized_neural_sampler_forward.1} parent=1 // pred_check
      _
    $region27: #{factorized_neural_sampler_forward.1} parent=1 // pred_check_branch
      %447 = sbr.rel (0) target = $region29
    $region28: #{factorized_neural_sampler_forward.1} parent=1 // pred_region
      %s449 = ssub.s32 128, 128
      %450 = vsyncadd [#allocation4], %s449
      %s452 = sshll.u32 [#allocation8], 4
      %s453 = int_to_ptr.vmem [resolvable:$true] %s452
      %455 = dma.vmem_to_hbm [thread:$0]  %s453, 128, %s3, [#allocation4]
    $region29: #{factorized_neural_sampler_forward.1} parent=1 // pred_fallthru
      _
    // Predicated region
    $region30: #{factorized_neural_sampler_forward.1} parent=1 // pred_check
      _
    $region31: #{factorized_neural_sampler_forward.1} parent=1 // pred_check_branch
      %457 = sbr.rel (0) target = $region33
    $region32: #{factorized_neural_sampler_forward.1} parent=1 // pred_region
      %458 = dma.done [#allocation4], 128
    $region33: #{factorized_neural_sampler_forward.1} parent=1 // pred_fallthru
      _
    %459 = vsyncpa [#allocation3], 1
    %460 = vsyncpa [#allocation6], 1
    %461 = vsyncpa [#allocation4], 1

</llo_original>
